<compile_context>
chip_gen: v7x
topology: tpu7x:2x2x1
jax: 0.10.0
libtpu: 0.0.40
codegen_flags: <defaults>
</compile_context>

<pallas_src>
import random

import jax
import jax.numpy as jnp
from jax.experimental import pallas as pl
from jax.experimental.pallas import tpu as pltpu


# ----------------------------------------------------------------------------
# Encoder: single-layer LSTM recurrence over the source sequence.
# The input projection (x_t @ W_ih + b) is precomputed for all steps; the grid
# only runs the serial part: gates = xg[t] + h @ W_hh, LSTM cell update.
# ----------------------------------------------------------------------------
def _encoder_kernel(xg_ref, whh_ref, enc_ref, hout_ref, cout_ref, h_sc, c_sc):
    t = pl.program_id(0)

    @pl.when(t == 0)
    def _():
        h_sc[...] = jnp.zeros_like(h_sc)
        c_sc[...] = jnp.zeros_like(c_sc)

    H = h_sc.shape[-1]
    h = h_sc[...]
    gates = xg_ref[0] + jnp.dot(h.astype(whh_ref.dtype), whh_ref[...],
                                preferred_element_type=jnp.float32)   # (B, 4H)

    # H is a multiple of 128 -> these lane slices are tile aligned.
    i_g = jax.nn.sigmoid(gates[:, 0 * H:1 * H])
    f_g = jax.nn.sigmoid(gates[:, 1 * H:2 * H])
    g_g = jnp.tanh(gates[:, 2 * H:3 * H])
    o_g = jax.nn.sigmoid(gates[:, 3 * H:4 * H])

    c_new = f_g * c_sc[...] + i_g * g_g
    h_new = o_g * jnp.tanh(c_new)

    h_sc[...] = h_new
    c_sc[...] = c_new
    enc_ref[0] = h_new.astype(enc_ref.dtype)     # (B, H) slab of (S, B, H)
    hout_ref[...] = h_new                        # constant block -> final state
    cout_ref[...] = c_new


def encoder_forward(x_gates, w_hh):
    S, B, G = x_gates.shape
    H = w_hh.shape[0]
    return pl.pallas_call(
        _encoder_kernel,
        out_shape=(
            jax.ShapeDtypeStruct((S, B, H), jnp.bfloat16),   # enc states (bf16 storage)
            jax.ShapeDtypeStruct((B, H), jnp.float32),       # final h
            jax.ShapeDtypeStruct((B, H), jnp.float32),       # final c
        ),
        grid_spec=pltpu.PrefetchScalarGridSpec(
            num_scalar_prefetch=0,
            grid=(S,),
            in_specs=[
                pl.BlockSpec((1, B, G), lambda t: (t, 0, 0)),
                pl.BlockSpec((H, G), lambda t: (0, 0)),
            ],
            out_specs=[
                pl.BlockSpec((1, B, H), lambda t: (t, 0, 0)),
                pl.BlockSpec((B, H), lambda t: (0, 0)),
                pl.BlockSpec((B, H), lambda t: (0, 0)),
            ],
            scratch_shapes=[
                pltpu.VMEM((B, H), jnp.float32),
                pltpu.VMEM((B, H), jnp.float32),
            ],
        ),
        compiler_params=pltpu.CompilerParams(
            dimension_semantics=("arbitrary",)),   # recurrence is order-dependent
    )(x_gates, w_hh)


# ----------------------------------------------------------------------------
# Fused decoder: one grid step per output position.
# Per step: select input embedding (teacher vs in-kernel greedy), MXU dot
# attention over the resident encoder states, fused LSTM gate matmul, vocab
# projection, and in-kernel argmax -> one-hot @ embedding for the next step.
# ----------------------------------------------------------------------------
def _decoder_kernel(tf_ref,                                   # (T-1,) i32, SMEM prefetch
                    temb_ref, enc_ref, h0_ref, c0_ref,
                    demb_ref, w_in_ref, b_in_ref, w_out_ref, b_out_ref,
                    out_ref,
                    h_sc, c_sc, gemb_sc, enc_sc):
    g = pl.program_id(0)
    B, H = h_sc.shape
    S = enc_sc.shape[1]
    V = w_out_ref.shape[1]

    @pl.when(g == 0)
    def _():
        h_sc[...] = h0_ref[...]
        c_sc[...] = c0_ref[...]
        gemb_sc[...] = jnp.zeros_like(gemb_sc)
        # One-time (S,B,H) -> (B,S,H) rearrangement into resident VMEM scratch
        # (no HBM transpose pass between encoder and decoder).
        for s in range(S):
            enc_sc[:, s:s + 1, :] = enc_ref[s][:, None, :]

    # ---- decoder input embedding: teacher token vs previous-step greedy ----
    w_t = (tf_ref[g] > 0).astype(jnp.float32)
    emb_in = w_t * temb_ref[0].astype(jnp.float32) + (1.0 - w_t) * gemb_sc[...]

    h = h_sc[...]                                             # (B, H) f32
    enc = enc_sc[...]                                         # (B, S, H) bf16

    # ---- dot attention on the MXU (uses previous hidden state) ----
    q = h.astype(enc.dtype)[:, None, :]                       # (B, 1, H)
    scores = jnp.einsum("bqh,bsh->bqs", q, enc,
                        preferred_element_type=jnp.float32)   # (B, 1, S)
    scores = scores - jnp.max(scores, axis=-1, keepdims=True)
    p = jnp.exp(scores)
    attn = p * pl.reciprocal(jnp.sum(p, axis=-1, keepdims=True), approx=True)
    context = jnp.einsum("bqs,bsh->bqh", attn.astype(enc.dtype), enc,
                         preferred_element_type=jnp.float32)[:, 0, :]   # (B, H)

    # ---- fused LSTM gates: [emb | context | h] @ [W_ih_e; W_ih_c; W_hh] ----
    x_cat = jnp.concatenate([emb_in, context, h], axis=1)     # (B, E + 2H)
    gates = (jnp.dot(x_cat.astype(w_in_ref.dtype), w_in_ref[...],
                     preferred_element_type=jnp.float32)
             + b_in_ref[...])                                 # (B, 4H)

    i_g = jax.nn.sigmoid(gates[:, 0 * H:1 * H])
    f_g = jax.nn.sigmoid(gates[:, 1 * H:2 * H])
    g_g = jnp.tanh(gates[:, 2 * H:3 * H])
    o_g = jax.nn.sigmoid(gates[:, 3 * H:4 * H])

    c_new = f_g * c_sc[...] + i_g * g_g
    h_new = o_g * jnp.tanh(c_new)
    h_sc[...] = h_new
    c_sc[...] = c_new

    # ---- vocab projection (lane-dense V) ----
    logits = (jnp.dot(h_new.astype(w_out_ref.dtype), w_out_ref[...],
                      preferred_element_type=jnp.float32)
              + b_out_ref[...])                               # (B, V)
    out_ref[0] = logits

    # ---- in-kernel greedy argmax -> next-step embedding (one-hot @ emb) ----
    mx = jnp.max(logits, axis=1, keepdims=True)
    iota_v = jax.lax.broadcasted_iota(jnp.int32, (B, V), 1)
    first = jnp.min(jnp.where(logits >= mx, iota_v, V), axis=1, keepdims=True)
    onehot = (iota_v == first).astype(demb_ref.dtype)         # (B, V)
    gemb_sc[...] = jnp.dot(onehot, demb_ref[...],
                           preferred_element_type=jnp.float32)   # (B, E)


def decoder_forward(tf_flags, teach_emb, enc_sbh, h0, c0, p):
    Tm1, B, E = teach_emb.shape
    S, _, H = enc_sbh.shape
    K, G = p["dec_w_in"].shape
    V = p["dec_wout"].shape[1]

    return pl.pallas_call(
        _decoder_kernel,
        out_shape=jax.ShapeDtypeStruct((Tm1, B, V), jnp.float32),
        grid_spec=pltpu.PrefetchScalarGridSpec(
            num_scalar_prefetch=1,                 # teacher-forcing mask in SMEM
            grid=(Tm1,),
            in_specs=[
                pl.BlockSpec((1, B, E), lambda g, tf: (g, 0, 0)),   # teacher embeddings
                pl.BlockSpec((S, B, H), lambda g, tf: (0, 0, 0)),   # enc states (resident)
                pl.BlockSpec((B, H), lambda g, tf: (0, 0)),         # h0
                pl.BlockSpec((B, H), lambda g, tf: (0, 0)),         # c0
                pl.BlockSpec((V, E), lambda g, tf: (0, 0)),         # decoder embedding table
                pl.BlockSpec((K, G), lambda g, tf: (0, 0)),         # stacked gate weights
                pl.BlockSpec((1, G), lambda g, tf: (0, 0)),         # gate bias
                pl.BlockSpec((H, V), lambda g, tf: (0, 0)),         # W_out
                pl.BlockSpec((1, V), lambda g, tf: (0, 0)),         # b_out
            ],
            out_specs=pl.BlockSpec((1, B, V), lambda g, tf: (g, 0, 0)),
            scratch_shapes=[
                pltpu.VMEM((B, H), jnp.float32),        # h carry
                pltpu.VMEM((B, H), jnp.float32),        # c carry
                pltpu.VMEM((B, E), jnp.float32),        # greedy next-input embedding
                pltpu.VMEM((B, S, H), enc_sbh.dtype),   # enc in (B,S,H) layout
            ],
        ),
        compiler_params=pltpu.CompilerParams(
            dimension_semantics=("arbitrary",),          # serial recurrence
            vmem_limit_bytes=32 * 1024 * 1024),          # headroom for resident weights
    )(tf_flags, teach_emb, enc_sbh, h0, c0,
      p["dec_emb"], p["dec_w_in"], p["dec_b"], p["dec_wout"], p["dec_bout"])


# ----------------------------------------------------------------------------
# Seq2seq.forward
# ----------------------------------------------------------------------------
def seq2seq_forward(params, src_seqs, tgt_seqs, maxlen, sos_id,
                    teaching_force_ratio=0.5):
    B = src_seqs.shape[1]
    V = params["dec_wout"].shape[1]

    # ---- encoder: embedding gather + hoisted input projection (host XLA),
    #      serial h @ W_hh recurrence in Pallas ----
    x_emb = jnp.take(params["enc_emb"], src_seqs, axis=0)             # (S, B, E)
    x_gates = (jnp.einsum("sbe,eg->sbg", x_emb, params["enc_wih"])
               + params["enc_b"][None]).astype(jnp.float32)           # (S, B, 4H)
    enc_sbh, h, c = encoder_forward(x_gates, params["enc_whh"])

    # ---- decoder: precompute teacher tokens / coin flips, then one fused kernel ----
    if tgt_seqs is None:
        teach_tok = jnp.full((maxlen - 1, B), sos_id, dtype=jnp.int32)
        tf_host = [True] + [False] * (maxlen - 2)   # step 0 feeds <sos>, then greedy
    else:
        maxlen = int(tgt_seqs.shape[0])
        teach_tok = tgt_seqs[:maxlen - 1]
        # Reference draws one coin per loop iteration i=1..maxlen-1; the coin at
        # iteration i selects the input of iteration i+1 (last coin unused).
        draws = [random.random() < teaching_force_ratio for _ in range(1, maxlen)]
        tf_host = [True] + draws[:maxlen - 2]
    tf_flags = jnp.asarray(tf_host, dtype=jnp.int32)                  # (T-1,)
    teach_emb = jnp.take(params["dec_emb"], teach_tok, axis=0)        # (T-1, B, E)

    preds = decoder_forward(tf_flags, teach_emb, enc_sbh, h, c, params)
    outputs = jnp.concatenate(
        [jnp.zeros((1, B, V), jnp.float32), preds], axis=0)           # outputs[0] == 0
    return outputs


# TODO(synk): `beam()` (host-side PriorityQueue beam search with data-dependent
# control flow) has no clean Pallas equivalent; only forward() is implemented.


def init_params(key, V, E, H):
    ks = jax.random.split(key, 11)
    s = 0.1
    return {
        "enc_emb":   s * jax.random.normal(ks[0], (V, E), jnp.float32),
        "enc_wih":   s * jax.random.normal(ks[1], (E, 4 * H), jnp.float32),
        "enc_whh":   s * jax.random.normal(ks[2], (H, 4 * H), jnp.float32),
        "enc_b":     s * jax.random.normal(ks[3], (1, 4 * H), jnp.float32),
        "dec_emb":   s * jax.random.normal(ks[4], (V, E), jnp.float32),
        "dec_wih_e": s * jax.random.normal(ks[5], (E, 4 * H), jnp.float32),
        "dec_wih_c": s * jax.random.normal(ks[6], (H, 4 * H), jnp.float32),
        "dec_whh":   s * jax.random.normal(ks[7], (H, 4 * H), jnp.float32),
        "dec_b":     s * jax.random.normal(ks[8], (1, 4 * H), jnp.float32),
        "dec_wout":  s * jax.random.normal(ks[9], (H, V), jnp.float32),
        "dec_bout":  s * jax.random.normal(ks[10], (1, V), jnp.float32),
    }


def prepare_params(raw, weight_dtype=jnp.bfloat16):
    """Pre-stack / pre-cast weights once (not per step)."""
    return {
        "enc_emb": raw["enc_emb"],                    # f32: host gather + hoisted matmul
        "enc_wih": raw["enc_wih"],
        "enc_b":   raw["enc_b"],
        "enc_whh": raw["enc_whh"].astype(weight_dtype),
        "dec_emb": raw["dec_emb"].astype(weight_dtype),
        "dec_w_in": jnp.concatenate(
            [raw["dec_wih_e"], raw["dec_wih_c"], raw["dec_whh"]],
            axis=0).astype(weight_dtype),             # (E+2H, 4H)
        "dec_b":   raw["dec_b"],                      # biases stay f32
        "dec_wout": raw["dec_wout"].astype(weight_dtype),
        "dec_bout": raw["dec_bout"],
    }


if __name__ == "__main__":
    random.seed(0)                       # deterministic teacher-forcing draws
    key = jax.random.PRNGKey(0)

    # Small but lane/sublane-dense shapes (perf review: B >= 8, E/H/V multiples of 128).
    S, T, B = 8, 8, 8                    # src len, tgt len (maxlen), batch
    V, E, H = 128, 128, 128              # vocab, embed dim, hidden dim
    SOS_ID = 1

    kp, ks, kt = jax.random.split(key, 3)
    params = prepare_params(init_params(kp, V, E, H))
    src_seqs = jax.random.randint(ks, (S, B), 0, V, dtype=jnp.int32)
    tgt_seqs = jax.random.randint(kt, (T, B), 0, V, dtype=jnp.int32)

    outputs = seq2seq_forward(params, src_seqs, tgt_seqs, maxlen=T,
                              sos_id=SOS_ID, teaching_force_ratio=0.5)
    jax.block_until_ready(outputs)
    assert outputs.shape == (T, B, V)
    assert bool(jnp.all(outputs[0] == 0.0))
    assert bool(jnp.all(jnp.isfinite(outputs)))
    print("KERNEL_OK")
</pallas_src>

<mosaic_0001>
module attributes {stable_mosaic.version = 11 : i64} {
  func.func @_encoder_kernel(%arg0: i32, %arg1: memref<1x8x512xf32, #tpu.memory_space<vmem>>, %arg2: memref<128x512xbf16, #tpu.memory_space<vmem>>, %arg3: memref<1x8x128xbf16, #tpu.memory_space<vmem>>, %arg4: memref<8x128xf32, #tpu.memory_space<vmem>>, %arg5: memref<8x128xf32, #tpu.memory_space<vmem>>, %arg6: memref<8x128xf32, #tpu.memory_space<vmem>>, %arg7: memref<8x128xf32, #tpu.memory_space<vmem>>) attributes {dimension_semantics = [#tpu.dimension_semantics<arbitrary>], iteration_bounds = array<i64: 8>, scalar_prefetch = 0 : i64, scratch_operands = 2 : i64, tpu.core_type = #tpu.core_type<tc>, window_params = [{transform_indices = @transform_0, window_bounds = array<i64: 1, 8, 512>}, {pipeline_mode = #tpu.pipeline_mode<synchronous>, transform_indices = @transform_1, window_bounds = array<i64: 128, 512>}, {transform_indices = @transform_2, window_bounds = array<i64: 1, 8, 128>}, {pipeline_mode = #tpu.pipeline_mode<synchronous>, transform_indices = @transform_3, window_bounds = array<i64: 8, 128>}, {pipeline_mode = #tpu.pipeline_mode<synchronous>, transform_indices = @transform_4, window_bounds = array<i64: 8, 128>}]} {
    %c0_i32 = arith.constant 0 : i32
    %0 = arith.cmpi eq, %arg0, %c0_i32 : i32
    %1 = arith.extui %0 : i1 to i32
    %c0_i32_0 = arith.constant 0 : i32
    %2 = arith.cmpi ne, %1, %c0_i32_0 : i32
    scf.if %2 {
      %cst_23 = arith.constant 0.000000e+00 : f32
      %44 = vector.broadcast %cst_23 : f32 to vector<8x128xf32>
      %c0_24 = arith.constant 0 : index
      %c0_25 = arith.constant 0 : index
      %45 = vector.load %arg6[%c0_24, %c0_25] : memref<8x128xf32, #tpu.memory_space<vmem>>, vector<8x128xf32>
      tpu.vector_store %arg6[%c0_24, %c0_25], %44 {strides = array<i32>} : memref<8x128xf32, #tpu.memory_space<vmem>>, vector<8x128xf32>,
      %cst_26 = arith.constant 0.000000e+00 : f32
      %46 = vector.broadcast %cst_26 : f32 to vector<8x128xf32>
      %c0_27 = arith.constant 0 : index
      %c0_28 = arith.constant 0 : index
      %47 = vector.load %arg7[%c0_27, %c0_28] : memref<8x128xf32, #tpu.memory_space<vmem>>, vector<8x128xf32>
      tpu.vector_store %arg7[%c0_27, %c0_28], %46 {strides = array<i32>} : memref<8x128xf32, #tpu.memory_space<vmem>>, vector<8x128xf32>,
    } else {
    }
    %c0 = arith.constant 0 : index
    %c0_1 = arith.constant 0 : index
    %3 = vector.load %arg6[%c0, %c0_1] : memref<8x128xf32, #tpu.memory_space<vmem>>, vector<8x128xf32>
    %c0_2 = arith.constant 0 : index
    %c0_3 = arith.constant 0 : index
    %c0_4 = arith.constant 0 : index
    %4 = vector.load %arg1[%c0_2, %c0_3, %c0_4] : memref<1x8x512xf32, #tpu.memory_space<vmem>>, vector<1x8x512xf32>
    %5 = vector.shape_cast %4 : vector<1x8x512xf32> to vector<8x512xf32>
    %6 = arith.truncf %3 : vector<8x128xf32> to vector<8x128xbf16>
    %c0_5 = arith.constant 0 : index
    %c0_6 = arith.constant 0 : index
    %7 = vector.load %arg2[%c0_5, %c0_6] : memref<128x512xbf16, #tpu.memory_space<vmem>>, vector<128x512xbf16>
    %cst = arith.constant dense<0.000000e+00> : vector<8x512xf32>
    %8 = tpu.matmul %6, %7, %cst {dimension_numbers = #tpu.dot_dimension_numbers<[1], [0], [0], [1], [0, 0, 1, 1], [], []>} : vector<8x128xbf16>, vector<128x512xbf16>, vector<8x512xf32> -> vector<8x512xf32>
    %9 = arith.addf %5, %8 : vector<8x512xf32>
    %10 = vector.extract_strided_slice %9 {offsets = [0, 0], sizes = [8, 128], strides = [1, 1]} : vector<8x512xf32> to vector<8x128xf32>
    %11 = arith.negf %10 : vector<8x128xf32>
    %12 = math.exp %11 : vector<8x128xf32>
    %cst_7 = arith.constant 1.000000e+00 : f32
    %13 = vector.broadcast %cst_7 : f32 to vector<8x128xf32>
    %14 = arith.addf %13, %12 : vector<8x128xf32>
    %15 = arith.divf %13, %14 : vector<8x128xf32>
    %16 = vector.extract_strided_slice %9 {offsets = [0, 128], sizes = [8, 128], strides = [1, 1]} : vector<8x512xf32> to vector<8x128xf32>
    %17 = arith.negf %16 : vector<8x128xf32>
    %18 = math.exp %17 : vector<8x128xf32>
    %cst_8 = arith.constant 1.000000e+00 : f32
    %19 = vector.broadcast %cst_8 : f32 to vector<8x128xf32>
    %20 = arith.addf %19, %18 : vector<8x128xf32>
    %21 = arith.divf %19, %20 : vector<8x128xf32>
    %22 = vector.extract_strided_slice %9 {offsets = [0, 256], sizes = [8, 128], strides = [1, 1]} : vector<8x512xf32> to vector<8x128xf32>
    %23 = math.tanh %22 : vector<8x128xf32>
    %24 = vector.extract_strided_slice %9 {offsets = [0, 384], sizes = [8, 128], strides = [1, 1]} : vector<8x512xf32> to vector<8x128xf32>
    %25 = arith.negf %24 : vector<8x128xf32>
    %26 = math.exp %25 : vector<8x128xf32>
    %cst_9 = arith.constant 1.000000e+00 : f32
    %27 = vector.broadcast %cst_9 : f32 to vector<8x128xf32>
    %28 = arith.addf %27, %26 : vector<8x128xf32>
    %29 = arith.divf %27, %28 : vector<8x128xf32>
    %c0_10 = arith.constant 0 : index
    %c0_11 = arith.constant 0 : index
    %30 = vector.load %arg7[%c0_10, %c0_11] : memref<8x128xf32, #tpu.memory_space<vmem>>, vector<8x128xf32>
    %31 = arith.mulf %21, %30 : vector<8x128xf32>
    %32 = arith.mulf %15, %23 : vector<8x128xf32>
    %33 = arith.addf %31, %32 : vector<8x128xf32>
    %34 = math.tanh %33 : vector<8x128xf32>
    %35 = arith.mulf %29, %34 : vector<8x128xf32>
    %c0_12 = arith.constant 0 : index
    %c0_13 = arith.constant 0 : index
    %36 = vector.load %arg6[%c0_12, %c0_13] : memref<8x128xf32, #tpu.memory_space<vmem>>, vector<8x128xf32>
    tpu.vector_store %arg6[%c0_12, %c0_13], %35 {strides = array<i32>} : memref<8x128xf32, #tpu.memory_space<vmem>>, vector<8x128xf32>,
    %c0_14 = arith.constant 0 : index
    %c0_15 = arith.constant 0 : index
    %37 = vector.load %arg7[%c0_14, %c0_15] : memref<8x128xf32, #tpu.memory_space<vmem>>, vector<8x128xf32>
    tpu.vector_store %arg7[%c0_14, %c0_15], %33 {strides = array<i32>} : memref<8x128xf32, #tpu.memory_space<vmem>>, vector<8x128xf32>,
    %38 = arith.truncf %35 : vector<8x128xf32> to vector<8x128xbf16>
    %c0_16 = arith.constant 0 : index
    %c0_17 = arith.constant 0 : index
    %c0_18 = arith.constant 0 : index
    %39 = vector.load %arg3[%c0_16, %c0_17, %c0_18] : memref<1x8x128xbf16, #tpu.memory_space<vmem>>, vector<1x8x128xbf16>
    %40 = vector.shape_cast %39 : vector<1x8x128xbf16> to vector<8x128xbf16>
    %41 = vector.shape_cast %38 : vector<8x128xbf16> to vector<1x8x128xbf16>
    tpu.vector_store %arg3[%c0_16, %c0_17, %c0_18], %41 {strides = array<i32>} : memref<1x8x128xbf16, #tpu.memory_space<vmem>>, vector<1x8x128xbf16>,
    %c0_19 = arith.constant 0 : index
    %c0_20 = arith.constant 0 : index
    %42 = vector.load %arg4[%c0_19, %c0_20] : memref<8x128xf32, #tpu.memory_space<vmem>>, vector<8x128xf32>
    tpu.vector_store %arg4[%c0_19, %c0_20], %35 {strides = array<i32>} : memref<8x128xf32, #tpu.memory_space<vmem>>, vector<8x128xf32>,
    %c0_21 = arith.constant 0 : index
    %c0_22 = arith.constant 0 : index
    %43 = vector.load %arg5[%c0_21, %c0_22] : memref<8x128xf32, #tpu.memory_space<vmem>>, vector<8x128xf32>
    tpu.vector_store %arg5[%c0_21, %c0_22], %33 {strides = array<i32>} : memref<8x128xf32, #tpu.memory_space<vmem>>, vector<8x128xf32>,
    return
  }
  func.func @transform_0(%arg0: i32) -> (i32, i32, i32) {
    %c0_i32 = arith.constant 0 : i32
    %c0_i32_0 = arith.constant 0 : i32
    %c0_i32_1 = arith.constant 0 : i32
    return %arg0, %c0_i32, %c0_i32_0 : i32, i32, i32
  }
  func.func @transform_1(%arg0: i32) -> (i32, i32) {
    %c0_i32 = arith.constant 0 : i32
    %c0_i32_0 = arith.constant 0 : i32
    %c0_i32_1 = arith.constant 0 : i32
    return %c0_i32, %c0_i32_0 : i32, i32
  }
  func.func @transform_2(%arg0: i32) -> (i32, i32, i32) {
    %c0_i32 = arith.constant 0 : i32
    %c0_i32_0 = arith.constant 0 : i32
    %c0_i32_1 = arith.constant 0 : i32
    return %arg0, %c0_i32, %c0_i32_0 : i32, i32, i32
  }
  func.func @transform_3(%arg0: i32) -> (i32, i32) {
    %c0_i32 = arith.constant 0 : i32
    %c0_i32_0 = arith.constant 0 : i32
    %c0_i32_1 = arith.constant 0 : i32
    return %c0_i32, %c0_i32_0 : i32, i32
  }
  func.func @transform_4(%arg0: i32) -> (i32, i32) {
    %c0_i32 = arith.constant 0 : i32
    %c0_i32_0 = arith.constant 0 : i32
    %c0_i32_1 = arith.constant 0 : i32
    return %c0_i32, %c0_i32_0 : i32, i32
  }
}

</mosaic_0001>

<llo_original>
// kernel: tpu_custom_call.1
$region0: #{tpu_custom_call.1}
  #allocation0 [shape = 'u32[]', space=smem, size = 0x4, offset = 0x4, fixed_abs, tag = 'smem constant byte address 0x4 - core index']
  #allocation1 [shape = 'u32[144,128]{1,0:T(1,128)}', space=vmem, size = 0x12000, scoped, tag = 'internal scratch']
  #allocation2 [shape = 'f32[8,128]{1,0:T(8,128)}', space=vmem, size = 0x1000, scoped, tag = 'scratch operand']
  #allocation3 [shape = 'f32[8,128]{1,0:T(8,128)}', space=vmem, size = 0x1000, scoped, tag = 'scratch operand']
  %s0 = inlined_call_operand.hbm [shape: f32[8,8,512], index: 0, kind: input, shape index: {}]
  %s1 = inlined_call_operand.hbm [shape: bf16[128,512], index: 1, kind: input, shape index: {}]
  %s2 = inlined_call_operand.hbm [shape: bf16[8,8,128], index: 2, kind: output, shape index: {0}]
  %s3 = inlined_call_operand.hbm [shape: f32[8,128], index: 3, kind: output, shape index: {1}]
  %s4 = inlined_call_operand.hbm [shape: f32[8,128], index: 4, kind: output, shape index: {2}]
  %5 = xla_tuple %s2, %s3, %s4
  %s6 = sld [smem:[#allocation0]]
  $region69: #{tpu_custom_call.1} parent=0
    _
  %s8 = ssub.s32 1, %s6
  %s9 = scalar_select 0, %s8, %s6
  $region1: #{tpu_custom_call.1} parent=0
    #allocation4 [shape = 'u8[32768]{0}', space=vmem, size = 0x8000, scoped, tag = 'input window, operand 0']
    #allocation5 [shape = 's32[2]{0}', space=sflag, size = 0x8, scoped, tag = 'scoped memory for tpu_custom_call.1']
    #allocation6 [shape = 's32[2]{0}', space=sflag, size = 0x8, scoped, tag = 'scoped memory for tpu_custom_call.1']
    #allocation7 [shape = 'u8[131072]{0}', space=vmem, size = 0x20000, scoped, tag = 'input window, operand 1, single buffered']
    #allocation8 [shape = 's32[1]{0}', space=sflag, size = 0x4, scoped, tag = 'scoped memory for tpu_custom_call.1']
    #allocation9 [shape = 'u8[4096]{0}', space=vmem, size = 0x1000, scoped, tag = 'output window, operand 0']
    #allocation10 [shape = 'u8[4096]{0}', space=vmem, size = 0x1000, scoped, tag = 'output window, operand 1, single buffered']
    #allocation11 [shape = 's32[1]{0}', space=sflag, size = 0x4, scoped, tag = 'scoped memory for tpu_custom_call.1']
    #allocation12 [shape = 'u8[4096]{0}', space=vmem, size = 0x1000, scoped, tag = 'output window, operand 2, single buffered']
    %10 = vsyncpa [#allocation5], 0
    %s11 = scalar_lea.sflag [#allocation5], 1
    %12 = vsyncpa %s11, 0
    %13 = vsyncpa [#allocation8], 0
    %14 = vsyncpa [#allocation6], 0
    %s15 = scalar_lea.sflag [#allocation6], 1
    %16 = vsyncpa %s15, 0
    %17 = vsyncpa [#allocation11], 0
    loop: start=0, step=1, limit=10
    $region2: #{tpu_custom_call.1} parent=1 // loop_pre_header
      _
    $region3: #{tpu_custom_call.1} parent=1 // loop_header
      %s19 = sphi 0, %s23
      %p20 = scmp.ge.s32.totalorder %s19, 10
      %s29 = sphi 0, %s31
      %s32 = sphi 0, %s29
      %s33 = sphi 0, %s32
      %s49 = sphi 0, %s33
      %s53 = sphi 0, %s53
      %s55 = sphi 0, %s53
      %s56 = sphi 0, %s55
      %s70 = sphi 0, %s56
      %s76 = sphi 0, %s78
      %s79 = sphi 0, %s76
      %s80 = sphi 0, %s79
      %s96 = sphi 0, %s80
      %s100 = sphi 0, %s100
      %s102 = sphi 0, %s100
      %s103 = sphi 0, %s102
      %s117 = sphi 0, %s103
      %s121 = sphi 0, %s121
      %s123 = sphi 0, %s121
      %s124 = sphi 0, %s123
      %s138 = sphi 0, %s124
    $region4: #{tpu_custom_call.1} parent=1 // loop_header_branch
      %22 = sbr.rel (%p20) target = $region8
    $region5: #{tpu_custom_call.1} parent=1 // loop_body
      %s24 = ssub.s32 %s19, 1
      %s25 = ssub.s32 %s19, 2
      %s26 = sadd.s32 %s19, 1
      %s27 = ssub.s32 %s19, %s26
      %p28 = scmp.eq.s32.totalorder %s27, 0
      %s30 = sadd.s32 %s29, 1
      %s31 = scalar_select %p28, %s29, %s30
      %p34 = pneg %p28
      %p35 = scmp.eq.s32.totalorder %s19, 7
      %p36 = por %p34, %p35
      %p37 = scmp.ne.s32.totalorder %s29, %s32
      %p38 = scmp.eq.s32.totalorder %s19, 0
      %p39 = por %p37, %p38
      %p40 = scmp.ne.s32.totalorder %s29, %s32
      %p41 = scmp.eq.s32.totalorder %s24, 7
      %p42 = por %p40, %p41
      %p43 = scmp.ne.s32.totalorder %s32, %s33
      %p44 = scmp.eq.s32.totalorder %s24, 0
      %p45 = por %p43, %p44
      %p46 = scmp.ne.s32.totalorder %s32, %s33
      %p47 = scmp.eq.s32.totalorder %s25, 7
      %p48 = por %p46, %p47
      %p50 = scmp.ne.s32.totalorder %s33, %s49
      %p51 = scmp.eq.s32.totalorder %s25, 0
      %p52 = por %p50, %p51
      %s54 = sadd.s32 %s53, 1
      %p57 = scmp.eq.s32.totalorder %s19, 7
      %p58 = scmp.ne.s32.totalorder %s53, %s55
      %p59 = scmp.eq.s32.totalorder %s19, 0
      %p60 = por %p58, %p59
      %p61 = scmp.ne.s32.totalorder %s53, %s55
      %p62 = scmp.eq.s32.totalorder %s24, 7
      %p63 = por %p61, %p62
      %p64 = scmp.ne.s32.totalorder %s55, %s56
      %p65 = scmp.eq.s32.totalorder %s24, 0
      %p66 = por %p64, %p65
      %p67 = scmp.ne.s32.totalorder %s55, %s56
      %p68 = scmp.eq.s32.totalorder %s25, 7
      %p69 = por %p67, %p68
      %p71 = scmp.ne.s32.totalorder %s56, %s70
      %p72 = scmp.eq.s32.totalorder %s25, 0
      %p73 = por %p71, %p72
      %s74 = ssub.s32 %s19, %s26
      %p75 = scmp.eq.s32.totalorder %s74, 0
      %s77 = sadd.s32 %s76, 1
      %s78 = scalar_select %p75, %s76, %s77
      %p81 = pneg %p75
      %p82 = scmp.eq.s32.totalorder %s19, 7
      %p83 = por %p81, %p82
      %p84 = scmp.ne.s32.totalorder %s76, %s79
      %p85 = scmp.eq.s32.totalorder %s19, 0
      %p86 = por %p84, %p85
      %p87 = scmp.ne.s32.totalorder %s76, %s79
      %p88 = scmp.eq.s32.totalorder %s24, 7
      %p89 = por %p87, %p88
      %p90 = scmp.ne.s32.totalorder %s79, %s80
      %p91 = scmp.eq.s32.totalorder %s24, 0
      %p92 = por %p90, %p91
      %p93 = scmp.ne.s32.totalorder %s79, %s80
      %p94 = scmp.eq.s32.totalorder %s25, 7
      %p95 = por %p93, %p94
      %p97 = scmp.ne.s32.totalorder %s80, %s96
      %p98 = scmp.eq.s32.totalorder %s25, 0
      %p99 = por %p97, %p98
      %s101 = sadd.s32 %s100, 1
      %p104 = scmp.eq.s32.totalorder %s19, 7
      %p105 = scmp.ne.s32.totalorder %s100, %s102
      %p106 = scmp.eq.s32.totalorder %s19, 0
      %p107 = por %p105, %p106
      %p108 = scmp.ne.s32.totalorder %s100, %s102
      %p109 = scmp.eq.s32.totalorder %s24, 7
      %p110 = por %p108, %p109
      %p111 = scmp.ne.s32.totalorder %s102, %s103
      %p112 = scmp.eq.s32.totalorder %s24, 0
      %p113 = por %p111, %p112
      %p114 = scmp.ne.s32.totalorder %s102, %s103
      %p115 = scmp.eq.s32.totalorder %s25, 7
      %p116 = por %p114, %p115
      %p118 = scmp.ne.s32.totalorder %s103, %s117
      %p119 = scmp.eq.s32.totalorder %s25, 0
      %p120 = por %p118, %p119
      %s122 = sadd.s32 %s121, 1
      %p125 = scmp.eq.s32.totalorder %s19, 7
      %p126 = scmp.ne.s32.totalorder %s121, %s123
      %p127 = scmp.eq.s32.totalorder %s19, 0
      %p128 = por %p126, %p127
      %p129 = scmp.ne.s32.totalorder %s121, %s123
      %p130 = scmp.eq.s32.totalorder %s24, 7
      %p131 = por %p129, %p130
      %p132 = scmp.ne.s32.totalorder %s123, %s124
      %p133 = scmp.eq.s32.totalorder %s24, 0
      %p134 = por %p132, %p133
      %p135 = scmp.ne.s32.totalorder %s123, %s124
      %p136 = scmp.eq.s32.totalorder %s25, 7
      %p137 = por %p135, %p136
      %p139 = scmp.ne.s32.totalorder %s124, %s138
      %p140 = scmp.eq.s32.totalorder %s25, 0
      %p141 = por %p139, %p140
      %p142 = scmp.le.s32.totalorder 1, %s19
      %p143 = scmp.lt.s32.totalorder %s19, 9
      %p144 = pnand %p142, %p143
      %p145 = pneg %p144
      // Predicated region
      $region9: #{tpu_custom_call.1} parent=5 // pred_check
        _
      $region10: #{tpu_custom_call.1} parent=5 // pred_check_branch
        %147 = sbr.rel (%p144) target = $region12
      $region11: #{tpu_custom_call.1} parent=5 // pred_region
        %s148 = ssub.s32 %s19, 1
        // Predicated region
        $region13: #{tpu_custom_call.1} parent=11 // pred_check
          %p149 = pneg %p66
        $region14: #{tpu_custom_call.1} parent=11 // pred_check_branch
          %151 = sbr.rel (%p149) target = $region16
        $region15: #{tpu_custom_call.1} parent=11 // pred_region
          %s153 = ssub.s32 4096, 4096
          %154 = vsyncadd [#allocation8], %s153
          %s155 = sshll.u32 [#allocation7], 4
          %s156 = int_to_ptr.vmem [resolvable:$true] %s155
          %161 = dma.hbm_to_vmem [thread:$0]  %s1, 4096, %s156, [#allocation8], 256, 256, 16
        $region16: #{tpu_custom_call.1} parent=11 // pred_fallthru
          _
      $region12: #{tpu_custom_call.1} parent=5 // pred_fallthru
        _
      %p162 = scmp.lt.s32.totalorder %s19, 8
      // Predicated region
      $region17: #{tpu_custom_call.1} parent=5 // pred_check
        %p163 = pneg %p162
      $region18: #{tpu_custom_call.1} parent=5 // pred_check_branch
        %165 = sbr.rel (%p163) target = $region20
      $region19: #{tpu_custom_call.1} parent=5 // pred_region
        // Predicated region
        $region21: #{tpu_custom_call.1} parent=19 // pred_check
          %p166 = pneg %p39
        $region22: #{tpu_custom_call.1} parent=19 // pred_check_branch
          %168 = sbr.rel (%p166) target = $region24
        $region23: #{tpu_custom_call.1} parent=19 // pred_region
          %s169 = sand.u32 %s29, 1
          %s170 = scalar_lea.sflag [#allocation5], %s169
          %s171 = sand.u32 %s29, 1
          %s172 = smul.addr %s171, 32
          %s173 = scalar_lea.vmem [#allocation4], %s172
          %s175 = ssub.s32 512, 512
          %176 = vsyncadd %s170, %s175
          %s177 = smul.addr %s19, 4
          %s178 = smul.addr %s177, 128
          %s179 = scalar_lea.hbm %s0, %s178
          %s181 = sshll.u32 %s173, 4
          %s182 = int_to_ptr.vmem [resolvable:$true] %s181
          %184 = dma.hbm_to_vmem [thread:$0]  %s179, 512, %s182, %s170
        $region24: #{tpu_custom_call.1} parent=19 // pred_fallthru
          _
      $region20: #{tpu_custom_call.1} parent=5 // pred_fallthru
        _
      %p185 = scmp.le.s32.totalorder 1, %s19
      %p186 = scmp.lt.s32.totalorder %s19, 9
      %p187 = pnand %p185, %p186
      %p188 = pneg %p187
      // Predicated region
      $region25: #{tpu_custom_call.1} parent=5 // pred_check
        _
      $region26: #{tpu_custom_call.1} parent=5 // pred_check_branch
        %190 = sbr.rel (%p187) target = $region28
      $region27: #{tpu_custom_call.1} parent=5 // pred_region
        %s191 = ssub.s32 %s19, 1
        %s192 = sand.u32 %s32, 1
        %s193 = scalar_lea.sflag [#allocation5], %s192
        %s194 = sand.u32 %s32, 1
        %s195 = smul.addr %s194, 32
        %s196 = scalar_lea.vmem [#allocation4], %s195
        // Predicated region
        $region29: #{tpu_custom_call.1} parent=27 // pred_check
          %p197 = pneg %p45
        $region30: #{tpu_custom_call.1} parent=27 // pred_check_branch
          %199 = sbr.rel (%p197) target = $region32
        $region31: #{tpu_custom_call.1} parent=27 // pred_region
          %200 = dma.done %s193, 512
        $region32: #{tpu_custom_call.1} parent=27 // pred_fallthru
          _
        // Predicated region
        $region33: #{tpu_custom_call.1} parent=27 // pred_check
          %p201 = pneg %p66
        $region34: #{tpu_custom_call.1} parent=27 // pred_check_branch
          %203 = sbr.rel (%p201) target = $region36
        $region35: #{tpu_custom_call.1} parent=27 // pred_region
          %204 = dma.done [#allocation8], 4096
        $region36: #{tpu_custom_call.1} parent=27 // pred_fallthru
          _
        %s205 = sand.u32 %s32, 1
        %s206 = scalar_lea.sflag [#allocation5], %s205
        %s207 = sand.u32 %s32, 1
        %s208 = smul.addr %s207, 32
        %s209 = scalar_lea.vmem [#allocation4], %s208
        %p210 = pneg %p45
        %p211 = pneg %p42
        %p212 = pneg %p66
        %p213 = pneg %p63
        %p214 = pneg %p92
        %p215 = pneg %p89
        %s216 = sand.u32 %s79, 1
        %s217 = scalar_lea.sflag [#allocation6], %s216
        %s218 = sand.u32 %s79, 1
        %s219 = smul.addr %s218, 4
        %s220 = scalar_lea.vmem [#allocation9], %s219
        %p221 = pneg %p113
        %p222 = pneg %p110
        %p223 = pneg %p134
        %p224 = pneg %p131
        %p226 = scmp.eq.s32.totalorder %s24, 0
        // Predicated region
        $region37: #{tpu_custom_call.1} parent=27 // pred_check
          %p227 = pneg %p226
        $region38: #{tpu_custom_call.1} parent=27 // pred_check_branch
          %229 = sbr.rel (%p227) target = $region40
        $region39: #{tpu_custom_call.1} parent=27 // pred_region
          %230 = vst [vmem:[#allocation2] sm:$0xff] 0.0
          %231 = vst [vmem:[#allocation3] sm:$0xff] 0.0
        $region40: #{tpu_custom_call.1} parent=27 // pred_fallthru
          _
        %v232 = vld [vmem:[#allocation2] sm:$0xff]
        %v233 = vld [vmem:[%s196] sm:$0xff]
        %v234 = vld [vmem:[%s196 + $0x8] sm:$0xff]
        %v235 = vld [vmem:[%s196 + $0x10] sm:$0xff]
        %v236 = vld [vmem:[%s196 + $0x18] sm:$0xff]
        %v237 = vpack.c.bf16 %v232, %v232
        %v238 = vld [vmem:[#allocation7] sm:$0xff]
        %v239 = vld [vmem:[#allocation7 + $0x8] sm:$0xff]
        %v240 = vld [vmem:[#allocation7 + $0x10] sm:$0xff]
        %v241 = vld [vmem:[#allocation7 + $0x18] sm:$0xff]
        %v242 = vld [vmem:[#allocation7 + $0x20] sm:$0xff]
        %v243 = vld [vmem:[#allocation7 + $0x28] sm:$0xff]
        %v244 = vld [vmem:[#allocation7 + $0x30] sm:$0xff]
        %v245 = vld [vmem:[#allocation7 + $0x38] sm:$0xff]
        %v246 = vld [vmem:[#allocation7 + $0x40] sm:$0xff]
        %v247 = vld [vmem:[#allocation7 + $0x48] sm:$0xff]
        %v248 = vld [vmem:[#allocation7 + $0x50] sm:$0xff]
        %v249 = vld [vmem:[#allocation7 + $0x58] sm:$0xff]
        %v250 = vld [vmem:[#allocation7 + $0x60] sm:$0xff]
        %v251 = vld [vmem:[#allocation7 + $0x68] sm:$0xff]
        %v252 = vld [vmem:[#allocation7 + $0x70] sm:$0xff]
        %v253 = vld [vmem:[#allocation7 + $0x78] sm:$0xff]
        %v254 = vld [vmem:[#allocation7 + $0x80] sm:$0xff]
        %v255 = vld [vmem:[#allocation7 + $0x88] sm:$0xff]
        %v256 = vld [vmem:[#allocation7 + $0x90] sm:$0xff]
        %v257 = vld [vmem:[#allocation7 + $0x98] sm:$0xff]
        %v258 = vld [vmem:[#allocation7 + $0xa0] sm:$0xff]
        %v259 = vld [vmem:[#allocation7 + $0xa8] sm:$0xff]
        %v260 = vld [vmem:[#allocation7 + $0xb0] sm:$0xff]
        %v261 = vld [vmem:[#allocation7 + $0xb8] sm:$0xff]
        %v262 = vld [vmem:[#allocation7 + $0xc0] sm:$0xff]
        %v263 = vld [vmem:[#allocation7 + $0xc8] sm:$0xff]
        %v264 = vld [vmem:[#allocation7 + $0xd0] sm:$0xff]
        %v265 = vld [vmem:[#allocation7 + $0xd8] sm:$0xff]
        %v266 = vld [vmem:[#allocation7 + $0xe0] sm:$0xff]
        %v267 = vld [vmem:[#allocation7 + $0xe8] sm:$0xff]
        %v268 = vld [vmem:[#allocation7 + $0xf0] sm:$0xff]
        %v269 = vld [vmem:[#allocation7 + $0xf8] sm:$0xff]
        %v302 = vunpack.c.l.b16 %v238
        %v303 = vunpack.c.h.b16 %v238
        %v304 = vunpack.c.l.b16 %v239
        %v305 = vunpack.c.h.b16 %v239
        %v306 = vunpack.c.l.b16 %v240
        %v307 = vunpack.c.h.b16 %v240
        %v308 = vunpack.c.l.b16 %v241
        %v309 = vunpack.c.h.b16 %v241
        %v310 = vunpack.c.l.b16 %v242
        %v311 = vunpack.c.h.b16 %v242
        %v312 = vunpack.c.l.b16 %v243
        %v313 = vunpack.c.h.b16 %v243
        %v314 = vunpack.c.l.b16 %v244
        %v315 = vunpack.c.h.b16 %v244
        %v316 = vunpack.c.l.b16 %v245
        %v317 = vunpack.c.h.b16 %v245
        %v318 = vunpack.c.l.b16 %v246
        %v319 = vunpack.c.h.b16 %v246
        %v320 = vunpack.c.l.b16 %v247
        %v321 = vunpack.c.h.b16 %v247
        %v322 = vunpack.c.l.b16 %v248
        %v323 = vunpack.c.h.b16 %v248
        %v324 = vunpack.c.l.b16 %v249
        %v325 = vunpack.c.h.b16 %v249
        %v326 = vunpack.c.l.b16 %v250
        %v327 = vunpack.c.h.b16 %v250
        %v328 = vunpack.c.l.b16 %v251
        %v329 = vunpack.c.h.b16 %v251
        %v330 = vunpack.c.l.b16 %v252
        %v331 = vunpack.c.h.b16 %v252
        %v332 = vunpack.c.l.b16 %v253
        %v333 = vunpack.c.h.b16 %v253
        %v334 = vunpack.c.l.b16 %v254
        %v335 = vunpack.c.h.b16 %v254
        %v336 = vunpack.c.l.b16 %v255
        %v337 = vunpack.c.h.b16 %v255
        %v338 = vunpack.c.l.b16 %v256
        %v339 = vunpack.c.h.b16 %v256
        %v340 = vunpack.c.l.b16 %v257
        %v341 = vunpack.c.h.b16 %v257
        %v342 = vunpack.c.l.b16 %v258
        %v343 = vunpack.c.h.b16 %v258
        %v344 = vunpack.c.l.b16 %v259
        %v345 = vunpack.c.h.b16 %v259
        %v346 = vunpack.c.l.b16 %v260
        %v347 = vunpack.c.h.b16 %v260
        %v348 = vunpack.c.l.b16 %v261
        %v349 = vunpack.c.h.b16 %v261
        %v350 = vunpack.c.l.b16 %v262
        %v351 = vunpack.c.h.b16 %v262
        %v352 = vunpack.c.l.b16 %v263
        %v353 = vunpack.c.h.b16 %v263
        %v354 = vunpack.c.l.b16 %v264
        %v355 = vunpack.c.h.b16 %v264
        %v356 = vunpack.c.l.b16 %v265
        %v357 = vunpack.c.h.b16 %v265
        %v358 = vunpack.c.l.b16 %v266
        %v359 = vunpack.c.h.b16 %v266
        %v360 = vunpack.c.l.b16 %v267
        %v361 = vunpack.c.h.b16 %v267
        %v362 = vunpack.c.l.b16 %v268
        %v363 = vunpack.c.h.b16 %v268
        %v364 = vunpack.c.l.b16 %v269
        %v365 = vunpack.c.h.b16 %v269
        %v366 = vpack.c.b16 %v306, %v302
        %v367 = vpack.c.b16 %v307, %v303
        %v368 = vpack.c.b16 %v308, %v304
        %v369 = vpack.c.b16 %v309, %v305
        %v370 = vpack.c.b16 %v314, %v310
        %v371 = vpack.c.b16 %v315, %v311
        %v372 = vpack.c.b16 %v316, %v312
        %v373 = vpack.c.b16 %v317, %v313
        %v374 = vpack.c.b16 %v322, %v318
        %v375 = vpack.c.b16 %v323, %v319
        %v376 = vpack.c.b16 %v324, %v320
        %v377 = vpack.c.b16 %v325, %v321
        %v378 = vpack.c.b16 %v330, %v326
        %v379 = vpack.c.b16 %v331, %v327
        %v380 = vpack.c.b16 %v332, %v328
        %v381 = vpack.c.b16 %v333, %v329
        %v382 = vpack.c.b16 %v338, %v334
        %v383 = vpack.c.b16 %v339, %v335
        %v384 = vpack.c.b16 %v340, %v336
        %v385 = vpack.c.b16 %v341, %v337
        %v386 = vpack.c.b16 %v346, %v342
        %v387 = vpack.c.b16 %v347, %v343
        %v388 = vpack.c.b16 %v348, %v344
        %v389 = vpack.c.b16 %v349, %v345
        %v390 = vpack.c.b16 %v354, %v350
        %v391 = vpack.c.b16 %v355, %v351
        %v392 = vpack.c.b16 %v356, %v352
        %v393 = vpack.c.b16 %v357, %v353
        %v394 = vpack.c.b16 %v362, %v358
        %v395 = vpack.c.b16 %v363, %v359
        %v396 = vpack.c.b16 %v364, %v360
        %v397 = vpack.c.b16 %v365, %v361
        %430 = vmatprep.subr.bf16.mxu0 %v367
        %431 = vmatpush1.bf16.msra.mxu0 %v366
        %432 = vmatprep.subr.bf16.mxu0 %v371
        %433 = vmatpush1.bf16.msra.mxu0 %v370
        %434 = vmatprep.subr.bf16.mxu0 %v375
        %435 = vmatpush1.bf16.msra.mxu0 %v374
        %436 = vmatprep.subr.bf16.mxu0 %v379
        %437 = vmatpush1.bf16.msra.mxu0 %v378
        %438 = vmatprep.subr.bf16.mxu0 %v383
        %439 = vmatpush1.bf16.msra.mxu0 %v382
        %440 = vmatprep.subr.bf16.mxu0 %v387
        %441 = vmatpush1.bf16.msra.mxu0 %v386
        %442 = vmatprep.subr.bf16.mxu0 %v391
        %443 = vmatpush1.bf16.msra.mxu0 %v390
        %444 = vmatprep.subr.bf16.mxu0 %v395
        %445 = vmatpush1.bf16.msra.mxu0 %v394
        %446 = vmatprep.subr.bf16.mxu0 0
        %447 = vmatpush1.bf16.msra.mxu0 0
        %448 = vmatprep.subr.bf16.mxu0 0
        %449 = vmatpush1.bf16.msra.mxu0 0
        %450 = vmatprep.subr.bf16.mxu0 0
        %451 = vmatpush1.bf16.msra.mxu0 0
        %452 = vmatprep.subr.bf16.mxu0 0
        %453 = vmatpush1.bf16.msra.mxu0 0
        %454 = vmatprep.subr.bf16.mxu0 0
        %455 = vmatpush1.bf16.msra.mxu0 0
        %456 = vmatprep.subr.bf16.mxu0 0
        %457 = vmatpush1.bf16.msra.mxu0 0
        %458 = vmatprep.subr.bf16.mxu0 0
        %459 = vmatpush1.bf16.msra.mxu0 0
        %460 = vmatprep.subr.bf16.mxu0 0
        %461 = vmatpush1.bf16.msra.mxu0 0
        %462 = vmatprep.mubr.bf16.mxu0 0
        %463 = vmatmul.mubr.bf16.gmra.mrb[0].mxu0 %v237
        %v464 = vpop.f32.mrb[0].mxu0
        %v465 = vadd.f32 0.0, %v464
        %v466 = vpop.f32.mrb[0].mxu0
        %v467 = vadd.f32 0.0, %v466
        %v468 = vpop.f32.mrb[0].mxu0
        %v469 = vpop.f32.mrb[0].mxu0
        %470 = vdwg.mxu0
        %471 = vmatprep.subr.bf16.mxu0 %v369
        %472 = vmatpush1.bf16.msra.mxu0 %v368
        %473 = vmatprep.subr.bf16.mxu0 %v373
        %474 = vmatpush1.bf16.msra.mxu0 %v372
        %475 = vmatprep.subr.bf16.mxu0 %v377
        %476 = vmatpush1.bf16.msra.mxu0 %v376
        %477 = vmatprep.subr.bf16.mxu0 %v381
        %478 = vmatpush1.bf16.msra.mxu0 %v380
        %479 = vmatprep.subr.bf16.mxu0 %v385
        %480 = vmatpush1.bf16.msra.mxu0 %v384
        %481 = vmatprep.subr.bf16.mxu0 %v389
        %482 = vmatpush1.bf16.msra.mxu0 %v388
        %483 = vmatprep.subr.bf16.mxu0 %v393
        %484 = vmatpush1.bf16.msra.mxu0 %v392
        %485 = vmatprep.subr.bf16.mxu0 %v397
        %486 = vmatpush1.bf16.msra.mxu0 %v396
        %487 = vmatprep.subr.bf16.mxu0 0
        %488 = vmatpush1.bf16.msra.mxu0 0
        %489 = vmatprep.subr.bf16.mxu0 0
        %490 = vmatpush1.bf16.msra.mxu0 0
        %491 = vmatprep.subr.bf16.mxu0 0
        %492 = vmatpush1.bf16.msra.mxu0 0
        %493 = vmatprep.subr.bf16.mxu0 0
        %494 = vmatpush1.bf16.msra.mxu0 0
        %495 = vmatprep.subr.bf16.mxu0 0
        %496 = vmatpush1.bf16.msra.mxu0 0
        %497 = vmatprep.subr.bf16.mxu0 0
        %498 = vmatpush1.bf16.msra.mxu0 0
        %499 = vmatprep.subr.bf16.mxu0 0
        %500 = vmatpush1.bf16.msra.mxu0 0
        %501 = vmatprep.subr.bf16.mxu0 0
        %502 = vmatpush1.bf16.msra.mxu0 0
        %503 = vmatprep.mubr.bf16.mxu0 0
        %504 = vmatmul.mubr.bf16.gmra.mrb[0].mxu0 %v237
        %v505 = vpop.f32.mrb[0].mxu0
        %v506 = vadd.f32 0.0, %v505
        %v507 = vpop.f32.mrb[0].mxu0
        %v508 = vadd.f32 0.0, %v507
        %v509 = vpop.f32.mrb[0].mxu0
        %v510 = vpop.f32.mrb[0].mxu0
        %511 = vdwg.mxu0
        %v512 = vadd.f32 %v233, %v465
        %v513 = vadd.f32 %v234, %v467
        %v514 = vadd.f32 %v235, %v506
        %v515 = vadd.f32 %v236, %v508
        %v516 = vxor.u32 %v512, 2147483648
        %v517 = vmul.f32 %v516, 1.442695
        %v518 = vpow.pop %v517
        %v519 = vadd.f32 %v518, 1.0
        %v520 = vrcp.pop %v519
        %v521 = vmul.f32 1.0, %v520
        %v522 = vxor.u32 %v513, 2147483648
        %v523 = vmul.f32 %v522, 1.442695
        %v524 = vpow.pop %v523
        %v525 = vadd.f32 %v524, 1.0
        %v526 = vrcp.pop %v525
        %v527 = vmul.f32 1.0, %v526
        %v528 = vtanh.pop %v514
        %v529 = vxor.u32 %v515, 2147483648
        %v530 = vmul.f32 %v529, 1.442695
        %v531 = vpow.pop %v530
        %v532 = vadd.f32 %v531, 1.0
        %v533 = vrcp.pop %v532
        %v534 = vmul.f32 1.0, %v533
        %v535 = vld [vmem:[#allocation3] sm:$0xff]
        %v536 = vmul.f32 %v527, %v535
        %v537 = vmul.f32 %v521, %v528
        %v538 = vadd.f32 %v536, %v537
        %v539 = vtanh.pop %v538
        %v540 = vmul.f32 %v534, %v539
        %541 = vst [vmem:[#allocation2] sm:$0xff] %v540
        %542 = vst [vmem:[#allocation3] sm:$0xff] %v538
        %v543 = vpack.c.bf16 %v540, %v540
        %544 = vst [vmem:[%s220] sm:$0xf] %v543
        %545 = vst [vmem:[#allocation10] sm:$0xff] %v540
        %546 = vst [vmem:[#allocation12] sm:$0xff] %v538
        %s547 = sand.u32 %s79, 1
        %s548 = scalar_lea.sflag [#allocation6], %s547
        %s549 = sand.u32 %s79, 1
        %s550 = smul.addr %s549, 4
        %s551 = scalar_lea.vmem [#allocation9], %s550
        // Predicated region
        $region41: #{tpu_custom_call.1} parent=27 // pred_check
          %p552 = pneg %p89
        $region42: #{tpu_custom_call.1} parent=27 // pred_check_branch
          %554 = sbr.rel (%p552) target = $region44
        $region43: #{tpu_custom_call.1} parent=27 // pred_region
          %s556 = ssub.s32 64, 64
          %557 = vsyncadd %s548, %s556
          %s558 = smul.addr %s24, 64
          %s559 = scalar_lea.hbm %s2, %s558
          %s561 = sshll.u32 %s551, 4
          %s562 = int_to_ptr.vmem [resolvable:$true] %s561
          %564 = dma.vmem_to_hbm [thread:$0]  %s562, 64, %s559, %s548
        $region44: #{tpu_custom_call.1} parent=27 // pred_fallthru
          _
        // Predicated region
        $region45: #{tpu_custom_call.1} parent=27 // pred_check
          %p565 = pneg %p110
        $region46: #{tpu_custom_call.1} parent=27 // pred_check_branch
          %567 = sbr.rel (%p565) target = $region48
        $region47: #{tpu_custom_call.1} parent=27 // pred_region
          %s569 = ssub.s32 128, 128
          %570 = vsyncadd [#allocation11], %s569
          %s572 = sshll.u32 [#allocation10], 4
          %s573 = int_to_ptr.vmem [resolvable:$true] %s572
          %575 = dma.vmem_to_hbm [thread:$0]  %s573, 128, %s3, [#allocation11]
        $region48: #{tpu_custom_call.1} parent=27 // pred_fallthru
          _
        // Predicated region
        $region49: #{tpu_custom_call.1} parent=27 // pred_check
          %p576 = pneg %p131
        $region50: #{tpu_custom_call.1} parent=27 // pred_check_branch
          %578 = sbr.rel (%p576) target = $region52
        $region51: #{tpu_custom_call.1} parent=27 // pred_region
          %s580 = ssub.s32 128, 128
          %581 = vsyncadd [#allocation11], %s580
          %s583 = sshll.u32 [#allocation12], 4
          %s584 = int_to_ptr.vmem [resolvable:$true] %s583
          %586 = dma.vmem_to_hbm [thread:$0]  %s584, 128, %s4, [#allocation11]
        $region52: #{tpu_custom_call.1} parent=27 // pred_fallthru
          _
        // Predicated region
        $region53: #{tpu_custom_call.1} parent=27 // pred_check
          %p587 = pneg %p110
        $region54: #{tpu_custom_call.1} parent=27 // pred_check_branch
          %589 = sbr.rel (%p587) target = $region56
        $region55: #{tpu_custom_call.1} parent=27 // pred_region
          %590 = dma.done [#allocation11], 128
        $region56: #{tpu_custom_call.1} parent=27 // pred_fallthru
          _
        // Predicated region
        $region57: #{tpu_custom_call.1} parent=27 // pred_check
          %p591 = pneg %p131
        $region58: #{tpu_custom_call.1} parent=27 // pred_check_branch
          %593 = sbr.rel (%p591) target = $region60
        $region59: #{tpu_custom_call.1} parent=27 // pred_region
          %594 = dma.done [#allocation11], 128
        $region60: #{tpu_custom_call.1} parent=27 // pred_fallthru
          _
      $region28: #{tpu_custom_call.1} parent=5 // pred_fallthru
        _
      %p595 = scmp.le.s32.totalorder 2, %s19
      // Predicated region
      $region61: #{tpu_custom_call.1} parent=5 // pred_check
        %p596 = pneg %p595
      $region62: #{tpu_custom_call.1} parent=5 // pred_check_branch
        %598 = sbr.rel (%p596) target = $region64
      $region63: #{tpu_custom_call.1} parent=5 // pred_region
        %s599 = ssub.s32 %s19, 2
        // Predicated region
        $region65: #{tpu_custom_call.1} parent=63 // pred_check
          %p600 = pneg %p95
        $region66: #{tpu_custom_call.1} parent=63 // pred_check_branch
          %602 = sbr.rel (%p600) target = $region68
        $region67: #{tpu_custom_call.1} parent=63 // pred_region
          %s603 = sand.u32 %s80, 1
          %s604 = scalar_lea.sflag [#allocation6], %s603
          %s605 = sand.u32 %s80, 1
          %s606 = smul.addr %s605, 4
          %s607 = scalar_lea.vmem [#allocation9], %s606
          %608 = dma.done %s604, 64
        $region68: #{tpu_custom_call.1} parent=63 // pred_fallthru
          _
      $region64: #{tpu_custom_call.1} parent=5 // pred_fallthru
        _
    $region6: #{tpu_custom_call.1} parent=1 // loop_footer
      %s23 = sadd.s32 1, %s19
    $region7: #{tpu_custom_call.1} parent=1 // loop_footer_branch
      %18 = sbr.rel target = $region3
    $region8: #{tpu_custom_call.1} parent=1 // loop_exit
      _
    %609 = vsyncpa [#allocation5], 1
    %s610 = scalar_lea.sflag [#allocation5], 1
    %611 = vsyncpa %s610, 1
    %612 = vsyncpa [#allocation8], 1
    %613 = vsyncpa [#allocation6], 1
    %s614 = scalar_lea.sflag [#allocation6], 1
    %615 = vsyncpa %s614, 1
    %616 = vsyncpa [#allocation11], 1

</llo_original>
